<compile_context>
chip_gen: v7x
topology: tpu7x:2x2x1
jax: 0.10.0
libtpu: 0.0.40
codegen_flags: <defaults>
</compile_context>

<pallas_src>
import jax
import jax.numpy as jnp
from jax.experimental import pallas as pl
from jax.experimental.pallas import tpu as pltpu

FEATURES = 10


def _logreg_kernel(xw_ref, b_ref, o_ref):
    # xw_ref: (2, FEATURES) f32 in VMEM  -- row 0 = input vector, row 1 = weight
    # b_ref : (1, 1)        f32 in SMEM  -- bias scalar
    # o_ref : (1, 1)        f32 in VMEM
    x = xw_ref[0:1, :]                                   # (1, FEATURES)
    w = xw_ref[1:2, :]                                   # (1, FEATURES)
    z = jnp.sum(x * w, axis=-1, keepdims=True)           # VPU mul + XLU reduce -> (1, 1)
    o_ref[...] = jax.nn.sigmoid(z + b_ref[0, 0])         # EUP sigmoid, scalar-broadcast add


def logistic_regression(vector, weight, bias):
    """vector: (10,), weight: (10,), bias: (1,) -> (1,) float32 = sigmoid(x.w + b)."""
    # Single stacked vector input => one input DMA instead of two padded buffers.
    xw = jnp.stack(
        [vector.astype(jnp.float32), weight.astype(jnp.float32)], axis=0
    )                                                     # (2, FEATURES)
    b = bias.astype(jnp.float32).reshape(1, 1)

    out = pl.pallas_call(
        _logreg_kernel,
        out_shape=jax.ShapeDtypeStruct((1, 1), jnp.float32),
        in_specs=[
            pl.BlockSpec(memory_space=pltpu.MemorySpace.VMEM),   # whole (2,10) block
            pl.BlockSpec(memory_space=pltpu.MemorySpace.SMEM),   # bias scalar in SMEM
        ],
        out_specs=pl.BlockSpec(memory_space=pltpu.MemorySpace.VMEM),
        cost_estimate=pl.CostEstimate(
            flops=2 * FEATURES,
            transcendentals=1,
            bytes_accessed=(2 * FEATURES + 2) * 4,
        ),
    )(xw, b)
    return out.reshape(1)
    # TODO(synk): for real throughput, batch B samples per call with a lane-dense
    # (1, B) output and a 'parallel' batch grid axis (shards across v7x's 2 TCs).


if __name__ == "__main__":
    key = jax.random.PRNGKey(0)
    k_vec, k_w, k_b = jax.random.split(key, 3)

    vector = jax.random.normal(k_vec, (FEATURES,), dtype=jnp.float32)
    weight = jax.random.normal(k_w, (FEATURES,), dtype=jnp.float32)
    bias = jax.random.normal(k_b, (1,), dtype=jnp.float32)

    out = logistic_regression(vector, weight, bias)
    jax.block_until_ready(out)

    # sanity check against pure-JAX reference
    ref = jax.nn.sigmoid(jnp.dot(vector, weight) + bias)
    assert out.shape == (1,)
    assert jnp.allclose(out, ref, atol=1e-6), (out, ref)

    print("KERNEL_OK")
</pallas_src>

<mosaic_0001>
module attributes {stable_mosaic.version = 11 : i64} {
  func.func @_logreg_kernel(%arg0: memref<2x10xf32, #tpu.memory_space<vmem>>, %arg1: memref<1x1xf32, #tpu.memory_space<smem>>, %arg2: memref<1x1xf32, #tpu.memory_space<vmem>>) attributes {dimension_semantics = [], scalar_prefetch = 0 : i64, scratch_operands = 0 : i64, tpu.core_type = #tpu.core_type<tc>} {
    %c0 = arith.constant 0 : index
    %c0_0 = arith.constant 0 : index
    %0 = vector.load %arg0[%c0, %c0_0] : memref<2x10xf32, #tpu.memory_space<vmem>>, vector<1x10xf32>
    %c1 = arith.constant 1 : index
    %c0_1 = arith.constant 0 : index
    %1 = vector.load %arg0[%c1, %c0_1] : memref<2x10xf32, #tpu.memory_space<vmem>>, vector<1x10xf32>
    %2 = arith.mulf %0, %1 : vector<1x10xf32>
    %cst = arith.constant dense<0.000000e+00> : vector<1xf32>
    %3 = vector.multi_reduction <add>, %2, %cst [1] : vector<1x10xf32> to vector<1xf32>
    %4 = vector.shape_cast %3 : vector<1xf32> to vector<1x1xf32>
    %c0_2 = arith.constant 0 : index
    %c0_3 = arith.constant 0 : index
    %5 = memref.load %arg1[%c0_2, %c0_3] : memref<1x1xf32, #tpu.memory_space<smem>>
    %6 = vector.broadcast %5 : f32 to vector<1x1xf32>
    %7 = arith.addf %4, %6 : vector<1x1xf32>
    %8 = arith.negf %7 : vector<1x1xf32>
    %9 = math.exp %8 : vector<1x1xf32>
    %cst_4 = arith.constant 1.000000e+00 : f32
    %10 = vector.broadcast %cst_4 : f32 to vector<1x1xf32>
    %11 = arith.addf %10, %9 : vector<1x1xf32>
    %12 = arith.divf %10, %11 : vector<1x1xf32>
    %c0_5 = arith.constant 0 : index
    %c0_6 = arith.constant 0 : index
    %13 = vector.load %arg2[%c0_5, %c0_6] : memref<1x1xf32, #tpu.memory_space<vmem>>, vector<1x1xf32>
    tpu.vector_store %arg2[%c0_5, %c0_6], %12 {strides = array<i32>} : memref<1x1xf32, #tpu.memory_space<vmem>>, vector<1x1xf32>,
    return
  }
}

</mosaic_0001>

<llo_original>
// kernel: tpu_custom_call.1
$region0: #{tpu_custom_call.1}
  #allocation0 [shape = 'u32[]', space=smem, size = 0x4, offset = 0x4, fixed_abs, tag = 'smem constant byte address 0x4 - core index']
  #allocation1 [shape = 'u32[144,128]{1,0:T(1,128)}', space=vmem, size = 0x12000, scoped, tag = 'internal scratch']
  #allocation2 [shape = 'f32[1,1]{1,0:T(1,128)S(6)}', space=smem, size = 0x200, scoped, tag = 'scoped memory for tpu_custom_call.1']
  %s0 = inlined_call_operand.vmem [shape: f32[2,10], index: 0, kind: input, shape index: {}]
  %s1 = inlined_call_operand.<no memory space> [shape: f32[1,1], index: 1, kind: input, shape index: {}]
  %s2 = inlined_call_operand.hbm [shape: f32[1,1], index: 2, kind: output, shape index: {}]
  %s3 = sld [smem:[#allocation0]]
  $region18: #{tpu_custom_call.1} parent=0
    _
  %s5 = ssub.s32 1, %s3
  %s6 = scalar_select 0, %s5, %s3
  %7 = sst [smem:[#allocation2]] %s1
  $region1: #{tpu_custom_call.1} parent=0
    #allocation3 [shape = 'u8[512]{0}', space=vmem, size = 0x400, scoped, tag = 'output window, operand 0, single buffered']
    #allocation4 [shape = 's32[1]{0}', space=sflag, size = 0x4, scoped, tag = 'scoped memory for tpu_custom_call.1']
    %8 = vsyncpa [#allocation4], 0
    // Predicated region
    $region2: #{tpu_custom_call.1} parent=1 // pred_check
      _
    $region3: #{tpu_custom_call.1} parent=1 // pred_check_branch
      %10 = sbr.rel (0) target = $region5
    $region4: #{tpu_custom_call.1} parent=1 // pred_region
      _
    $region5: #{tpu_custom_call.1} parent=1 // pred_fallthru
      _
    // Predicated region
    $region6: #{tpu_custom_call.1} parent=1 // pred_check
      _
    $region7: #{tpu_custom_call.1} parent=1 // pred_check_branch
      %12 = sbr.rel (0) target = $region9
    $region8: #{tpu_custom_call.1} parent=1 // pred_region
      _
    $region9: #{tpu_custom_call.1} parent=1 // pred_fallthru
      _
    %v13 = vld [vmem:[%s0] sm:$0x1]
    %v14 = vld [vmem:[%s0 + $0x1] sm:$0x1]
    %v15 = vmul.f32 %v13, %v14
    %vm16 = vcmask 73728
    %v17 = vsel %vm16, %v15, 0.0
    %18 = vadd.xlane.f32.xlu0 %v17
    %v19 = vpop.xlane.xlu0 %18
    %s20 = sld [smem:[#allocation2]]
    %v21 = vstv %s20
    %v22 = vadd.f32 %v19, %v21
    %v23 = vxor.u32 %v22, 2147483648
    %v24 = vmul.f32 %v23, 1.442695
    %v25 = vpow.pop %v24
    %v26 = vadd.f32 %v25, 1.0
    %v27 = vrcp.pop %v26
    %v28 = vmul.f32 1.0, %v27
    %vm29 = vcmask 0
    %30 = vst.msk [vmem:[#allocation3] sm:$0x1] %vm29, %v28
    // Predicated region
    $region10: #{tpu_custom_call.1} parent=1 // pred_check
      _
    $region11: #{tpu_custom_call.1} parent=1 // pred_check_branch
      %32 = sbr.rel (0) target = $region13
    $region12: #{tpu_custom_call.1} parent=1 // pred_region
      %s34 = ssub.s32 16, 16
      %35 = vsyncadd [#allocation4], %s34
      %s37 = sshll.u32 [#allocation3], 4
      %s38 = int_to_ptr.vmem [resolvable:$true] %s37
      %40 = dma.vmem_to_hbm [thread:$0]  %s38, 16, %s2, [#allocation4]
    $region13: #{tpu_custom_call.1} parent=1 // pred_fallthru
      _
    // Predicated region
    $region14: #{tpu_custom_call.1} parent=1 // pred_check
      _
    $region15: #{tpu_custom_call.1} parent=1 // pred_check_branch
      %42 = sbr.rel (0) target = $region17
    $region16: #{tpu_custom_call.1} parent=1 // pred_region
      %43 = dma.done [#allocation4], 16
    $region17: #{tpu_custom_call.1} parent=1 // pred_fallthru
      _
    %44 = vsyncpa [#allocation4], 1

</llo_original>
